<compile_context>
chip_gen: v7x
topology: tpu7x:2x2x1
jax: 0.10.0
libtpu: 0.0.40
codegen_flags: <defaults>
</compile_context>

<pallas_src>
import functools

import jax
import jax.numpy as jnp
from jax.experimental import pallas as pl
from jax.experimental.pallas import tpu as pltpu


def _round_up(n, m):
    return ((n + m - 1) // m) * m


def _siamese_kernel(x1_ref, x2_ref, w1_ref, b1_ref, w2_ref, b2_ref,
                    o1_ref, o2_ref):
    # x1/x2: (TM, D) f32, w1: (D, H) bf16, b1: (1, H) f32,
    # w2: (H, E) bf16, b2: (1, E) f32, o1/o2: (TM, E) out dtype.
    w1 = w1_ref[...]
    b1 = b1_ref[...]
    w2 = w2_ref[...]
    b2 = b2_ref[...]

    def embed(x_f32):
        x = x_f32.astype(w1.dtype)                               # bf16 cast in-kernel
        h = jnp.dot(x, w1, preferred_element_type=jnp.float32)   # MXU, f32 acc
        h = jnp.maximum(h + b1, 0.0)                             # f32 VPU epilogue
        h = h.astype(w2.dtype)                                   # bf16 for MXU
        return jnp.dot(h, w2, preferred_element_type=jnp.float32) + b2

    o1_ref[...] = embed(x1_ref[...]).astype(o1_ref.dtype)
    o2_ref[...] = embed(x2_ref[...]).astype(o2_ref.dtype)


@functools.partial(jax.jit, static_argnames=("tm", "out_dtype"))
def siamese_forward(x1, x2, params, *, tm=512, out_dtype=None):
    """SiameseNet.forward: (f(x1), f(x2)) with shared weights, one kernel."""
    w1, b1, w2, b2 = params
    B = x1.shape[0]
    D, H = w1.shape
    E = w2.shape[1]
    out_dtype = x1.dtype if out_dtype is None else jnp.dtype(out_dtype)

    # Flatten (free, contiguous reshape).  Inputs stay f32; cast is in-kernel.
    x1f = x1.reshape(B, -1)
    x2f = x2.reshape(B, -1)

    # bf16 weights (no-op if the caller already stores them in bf16), f32 bias
    # rows for the epilogue.
    w1b = w1.astype(jnp.bfloat16)
    w2b = w2.astype(jnp.bfloat16)
    b1f = b1.reshape(1, H).astype(jnp.float32)
    b2f = b2.reshape(1, E).astype(jnp.float32)

    # Row tile: multiple of 8 sublanes; capped so the grid has >= 2 programs
    # whenever B allows (engages both v7x TensorCores).  No input padding: the
    # ragged final block is masked by Pallas.
    tm = max(8, min(tm, _round_up(pl.cdiv(B, 2), 8)))
    grid = (pl.cdiv(B, tm),)

    n_rows = grid[0] * tm                        # rows actually streamed/computed
    flops = 2 * (2 * n_rows) * (D * H + H * E)   # both branches, both layers
    bytes_accessed = (
        2 * n_rows * D * x1.dtype.itemsize       # x1 + x2 reads (f32)
        + 2 * n_rows * E * out_dtype.itemsize    # out1 + out2 writes
        + (D * H + H * E) * 2                    # bf16 weights
        + (H + E) * 4)                           # f32 biases

    out1, out2 = pl.pallas_call(
        _siamese_kernel,
        out_shape=(jax.ShapeDtypeStruct((B, E), out_dtype),
                   jax.ShapeDtypeStruct((B, E), out_dtype)),
        grid=grid,
        in_specs=[
            pl.BlockSpec((tm, D), lambda i: (i, 0)),   # x1 tile (pipelined)
            pl.BlockSpec((tm, D), lambda i: (i, 0)),   # x2 tile (pipelined)
            pl.BlockSpec((D, H), lambda i: (0, 0)),    # w1, VMEM-resident
            pl.BlockSpec((1, H), lambda i: (0, 0)),    # b1
            pl.BlockSpec((H, E), lambda i: (0, 0)),    # w2
            pl.BlockSpec((1, E), lambda i: (0, 0)),    # b2
        ],
        out_specs=(pl.BlockSpec((tm, E), lambda i: (i, 0)),
                   pl.BlockSpec((tm, E), lambda i: (i, 0))),
        compiler_params=pltpu.CompilerParams(
            dimension_semantics=("parallel",)),        # megacore sharding
        cost_estimate=pl.CostEstimate(
            flops=flops, transcendentals=0, bytes_accessed=bytes_accessed),
    )(x1f, x2f, w1b, b1f, w2b, b2f)

    return out1, out2


if __name__ == "__main__":
    key = jax.random.PRNGKey(0)
    kx1, kx2, kw1, kb1, kw2, kb2 = jax.random.split(key, 6)

    # Small shapes consistent with an image-pair siamese setup.
    B, C, H_img, W_img = 2, 4, 16, 16
    D = C * H_img * W_img          # 1024 flattened features
    HID = 128                      # hidden width (lane-aligned)
    E = 128                        # embedding width (lane-aligned)

    x1 = jax.random.normal(kx1, (B, C, H_img, W_img), jnp.float32)
    x2 = jax.random.normal(kx2, (B, C, H_img, W_img), jnp.float32)

    # Parameters: weights stored in bf16 ONCE at init (no per-call cast pass);
    # biases stay f32.
    w1 = (jax.random.normal(kw1, (D, HID), jnp.float32)
          / jnp.sqrt(D)).astype(jnp.bfloat16)
    b1 = jax.random.normal(kb1, (1, HID), jnp.float32) * 0.01
    w2 = (jax.random.normal(kw2, (HID, E), jnp.float32)
          / jnp.sqrt(HID)).astype(jnp.bfloat16)
    b2 = jax.random.normal(kb2, (1, E), jnp.float32) * 0.01
    params = (w1, b1, w2, b2)

    out1, out2 = siamese_forward(x1, x2, params)
    jax.block_until_ready((out1, out2))

    # Pure-JAX reference with the same bf16 operand / f32 accumulation recipe.
    def ref_embed(x):
        xf = x.reshape(x.shape[0], -1).astype(jnp.bfloat16)
        h = jnp.dot(xf, w1, preferred_element_type=jnp.float32)
        h = jnp.maximum(h + b1, 0.0).astype(jnp.bfloat16)
        o = jnp.dot(h, w2, preferred_element_type=jnp.float32) + b2
        return o.astype(jnp.float32)

    assert out1.shape == (B, E) and out2.shape == (B, E)
    assert out1.dtype == x1.dtype and out2.dtype == x2.dtype
    assert jnp.allclose(out1, ref_embed(x1), atol=2e-2, rtol=2e-2)
    assert jnp.allclose(out2, ref_embed(x2), atol=2e-2, rtol=2e-2)

    print("KERNEL_OK")
</pallas_src>

<mosaic_0001>
module attributes {stable_mosaic.version = 11 : i64} {
  func.func @_siamese_kernel(%arg0: i32, %arg1: memref<8x1024xf32, #tpu.memory_space<vmem>>, %arg2: memref<8x1024xf32, #tpu.memory_space<vmem>>, %arg3: memref<1024x128xbf16, #tpu.memory_space<vmem>>, %arg4: memref<1x128xf32, #tpu.memory_space<vmem>>, %arg5: memref<128x128xbf16, #tpu.memory_space<vmem>>, %arg6: memref<1x128xf32, #tpu.memory_space<vmem>>, %arg7: memref<8x128xf32, #tpu.memory_space<vmem>>, %arg8: memref<8x128xf32, #tpu.memory_space<vmem>>) attributes {dimension_semantics = [#tpu.dimension_semantics<parallel>], iteration_bounds = array<i64: 1>, scalar_prefetch = 0 : i64, scratch_operands = 0 : i64, tpu.core_type = #tpu.core_type<tc>, window_params = [{transform_indices = @transform_0, window_bounds = array<i64: 8, 1024>}, {transform_indices = @transform_1, window_bounds = array<i64: 8, 1024>}, {pipeline_mode = #tpu.pipeline_mode<synchronous>, transform_indices = @transform_2, window_bounds = array<i64: 1024, 128>}, {pipeline_mode = #tpu.pipeline_mode<synchronous>, transform_indices = @transform_3, window_bounds = array<i64: 1, 128>}, {pipeline_mode = #tpu.pipeline_mode<synchronous>, transform_indices = @transform_4, window_bounds = array<i64: 128, 128>}, {pipeline_mode = #tpu.pipeline_mode<synchronous>, transform_indices = @transform_5, window_bounds = array<i64: 1, 128>}, {transform_indices = @transform_6, window_bounds = array<i64: 8, 128>}, {transform_indices = @transform_7, window_bounds = array<i64: 8, 128>}]} {
    %c0 = arith.constant 0 : index
    %c0_0 = arith.constant 0 : index
    %0 = vector.load %arg3[%c0, %c0_0] : memref<1024x128xbf16, #tpu.memory_space<vmem>>, vector<1024x128xbf16>
    %c0_1 = arith.constant 0 : index
    %c0_2 = arith.constant 0 : index
    %1 = vector.load %arg4[%c0_1, %c0_2] : memref<1x128xf32, #tpu.memory_space<vmem>>, vector<1x128xf32>
    %c0_3 = arith.constant 0 : index
    %c0_4 = arith.constant 0 : index
    %2 = vector.load %arg5[%c0_3, %c0_4] : memref<128x128xbf16, #tpu.memory_space<vmem>>, vector<128x128xbf16>
    %c0_5 = arith.constant 0 : index
    %c0_6 = arith.constant 0 : index
    %3 = vector.load %arg6[%c0_5, %c0_6] : memref<1x128xf32, #tpu.memory_space<vmem>>, vector<1x128xf32>
    %c0_7 = arith.constant 0 : index
    %c0_8 = arith.constant 0 : index
    %4 = vector.load %arg1[%c0_7, %c0_8] : memref<8x1024xf32, #tpu.memory_space<vmem>>, vector<8x1024xf32>
    %5 = arith.truncf %4 : vector<8x1024xf32> to vector<8x1024xbf16>
    %cst = arith.constant dense<0.000000e+00> : vector<8x128xf32>
    %6 = tpu.matmul %5, %0, %cst {dimension_numbers = #tpu.dot_dimension_numbers<[1], [0], [0], [1], [0, 0, 1, 1], [], []>} : vector<8x1024xbf16>, vector<1024x128xbf16>, vector<8x128xf32> -> vector<8x128xf32>
    %7 = vector.broadcast %1 : vector<1x128xf32> to vector<8x128xf32>
    %8 = arith.addf %6, %7 : vector<8x128xf32>
    %cst_9 = arith.constant 0.000000e+00 : f32
    %9 = vector.broadcast %cst_9 : f32 to vector<8x128xf32>
    %10 = arith.maximumf %8, %9 : vector<8x128xf32>
    %11 = arith.truncf %10 : vector<8x128xf32> to vector<8x128xbf16>
    %cst_10 = arith.constant dense<0.000000e+00> : vector<8x128xf32>
    %12 = tpu.matmul %11, %2, %cst_10 {dimension_numbers = #tpu.dot_dimension_numbers<[1], [0], [0], [1], [0, 0, 1, 1], [], []>} : vector<8x128xbf16>, vector<128x128xbf16>, vector<8x128xf32> -> vector<8x128xf32>
    %13 = vector.broadcast %3 : vector<1x128xf32> to vector<8x128xf32>
    %14 = arith.addf %12, %13 : vector<8x128xf32>
    %c0_11 = arith.constant 0 : index
    %c0_12 = arith.constant 0 : index
    %15 = vector.load %arg7[%c0_11, %c0_12] : memref<8x128xf32, #tpu.memory_space<vmem>>, vector<8x128xf32>
    tpu.vector_store %arg7[%c0_11, %c0_12], %14 {strides = array<i32>} : memref<8x128xf32, #tpu.memory_space<vmem>>, vector<8x128xf32>,
    %c0_13 = arith.constant 0 : index
    %c0_14 = arith.constant 0 : index
    %16 = vector.load %arg2[%c0_13, %c0_14] : memref<8x1024xf32, #tpu.memory_space<vmem>>, vector<8x1024xf32>
    %17 = arith.truncf %16 : vector<8x1024xf32> to vector<8x1024xbf16>
    %cst_15 = arith.constant dense<0.000000e+00> : vector<8x128xf32>
    %18 = tpu.matmul %17, %0, %cst_15 {dimension_numbers = #tpu.dot_dimension_numbers<[1], [0], [0], [1], [0, 0, 1, 1], [], []>} : vector<8x1024xbf16>, vector<1024x128xbf16>, vector<8x128xf32> -> vector<8x128xf32>
    %19 = vector.broadcast %1 : vector<1x128xf32> to vector<8x128xf32>
    %20 = arith.addf %18, %19 : vector<8x128xf32>
    %cst_16 = arith.constant 0.000000e+00 : f32
    %21 = vector.broadcast %cst_16 : f32 to vector<8x128xf32>
    %22 = arith.maximumf %20, %21 : vector<8x128xf32>
    %23 = arith.truncf %22 : vector<8x128xf32> to vector<8x128xbf16>
    %cst_17 = arith.constant dense<0.000000e+00> : vector<8x128xf32>
    %24 = tpu.matmul %23, %2, %cst_17 {dimension_numbers = #tpu.dot_dimension_numbers<[1], [0], [0], [1], [0, 0, 1, 1], [], []>} : vector<8x128xbf16>, vector<128x128xbf16>, vector<8x128xf32> -> vector<8x128xf32>
    %25 = vector.broadcast %3 : vector<1x128xf32> to vector<8x128xf32>
    %26 = arith.addf %24, %25 : vector<8x128xf32>
    %c0_18 = arith.constant 0 : index
    %c0_19 = arith.constant 0 : index
    %27 = vector.load %arg8[%c0_18, %c0_19] : memref<8x128xf32, #tpu.memory_space<vmem>>, vector<8x128xf32>
    tpu.vector_store %arg8[%c0_18, %c0_19], %26 {strides = array<i32>} : memref<8x128xf32, #tpu.memory_space<vmem>>, vector<8x128xf32>,
    return
  }
  func.func @transform_0(%arg0: i32) -> (i32, i32) {
    %c0_i32 = arith.constant 0 : i32
    %c0_i32_0 = arith.constant 0 : i32
    return %arg0, %c0_i32 : i32, i32
  }
  func.func @transform_1(%arg0: i32) -> (i32, i32) {
    %c0_i32 = arith.constant 0 : i32
    %c0_i32_0 = arith.constant 0 : i32
    return %arg0, %c0_i32 : i32, i32
  }
  func.func @transform_2(%arg0: i32) -> (i32, i32) {
    %c0_i32 = arith.constant 0 : i32
    %c0_i32_0 = arith.constant 0 : i32
    %c0_i32_1 = arith.constant 0 : i32
    return %c0_i32, %c0_i32_0 : i32, i32
  }
  func.func @transform_3(%arg0: i32) -> (i32, i32) {
    %c0_i32 = arith.constant 0 : i32
    %c0_i32_0 = arith.constant 0 : i32
    %c0_i32_1 = arith.constant 0 : i32
    return %c0_i32, %c0_i32_0 : i32, i32
  }
  func.func @transform_4(%arg0: i32) -> (i32, i32) {
    %c0_i32 = arith.constant 0 : i32
    %c0_i32_0 = arith.constant 0 : i32
    %c0_i32_1 = arith.constant 0 : i32
    return %c0_i32, %c0_i32_0 : i32, i32
  }
  func.func @transform_5(%arg0: i32) -> (i32, i32) {
    %c0_i32 = arith.constant 0 : i32
    %c0_i32_0 = arith.constant 0 : i32
    %c0_i32_1 = arith.constant 0 : i32
    return %c0_i32, %c0_i32_0 : i32, i32
  }
  func.func @transform_6(%arg0: i32) -> (i32, i32) {
    %c0_i32 = arith.constant 0 : i32
    %c0_i32_0 = arith.constant 0 : i32
    return %arg0, %c0_i32 : i32, i32
  }
  func.func @transform_7(%arg0: i32) -> (i32, i32) {
    %c0_i32 = arith.constant 0 : i32
    %c0_i32_0 = arith.constant 0 : i32
    return %arg0, %c0_i32 : i32, i32
  }
}

</mosaic_0001>

<llo_original>
// kernel: siamese_forward.1
$region0: #{siamese_forward.1}
  #allocation0 [shape = 'u32[]', space=smem, size = 0x4, offset = 0x4, fixed_abs, tag = 'smem constant byte address 0x4 - core index']
  #allocation1 [shape = 'u32[144,128]{1,0:T(1,128)}', space=vmem, size = 0x12000, scoped, tag = 'internal scratch']
  %s0 = inlined_call_operand.vmem [shape: f32[2,1024], index: 0, kind: input, shape index: {}]
  %s1 = inlined_call_operand.vmem [shape: f32[2,1024], index: 1, kind: input, shape index: {}]
  %s2 = inlined_call_operand.hbm [shape: bf16[1024,128], index: 2, kind: input, shape index: {}]
  %s3 = inlined_call_operand.vmem [shape: f32[1,128], index: 3, kind: input, shape index: {}]
  %s4 = inlined_call_operand.vmem [shape: bf16[128,128], index: 4, kind: input, shape index: {}]
  %s5 = inlined_call_operand.vmem [shape: f32[1,128], index: 5, kind: input, shape index: {}]
  %s6 = inlined_call_operand.hbm [shape: f32[2,128], index: 6, kind: output, shape index: {0}]
  %s7 = inlined_call_operand.hbm [shape: f32[2,128], index: 7, kind: output, shape index: {1}]
  %8 = xla_tuple %s6, %s7
  %s9 = sld [smem:[#allocation0]]
  $region46: #{siamese_forward.1} parent=0
    _
  %s11 = ssub.s32 1, %s9
  %s12 = scalar_select 0, %s11, %s9
  $region1: #{siamese_forward.1} parent=0
    #allocation2 [shape = 'u8[262144]{0}', space=vmem, size = 0x40000, scoped, tag = 'input window, operand 2, single buffered']
    #allocation3 [shape = 's32[1]{0}', space=sflag, size = 0x4, scoped, tag = 'scoped memory for siamese_forward.1']
    #allocation4 [shape = 's32[1]{0}', space=sflag, size = 0x4, scoped, tag = 'scoped memory for siamese_forward.1']
    #allocation5 [shape = 'u8[4096]{0}', space=vmem, size = 0x1000, scoped, tag = 'output window, operand 0, single buffered']
    #allocation6 [shape = 'u8[4096]{0}', space=vmem, size = 0x1000, scoped, tag = 'output window, operand 1, single buffered']
    #allocation7 [shape = 's32[1]{0}', space=sflag, size = 0x4, scoped, tag = 'scoped memory for siamese_forward.1']
    %13 = vsyncpa [#allocation3], 0
    %14 = vsyncpa [#allocation4], 0
    %15 = vsyncpa [#allocation7], 0
    // Predicated region
    $region2: #{siamese_forward.1} parent=1 // pred_check
      _
    $region3: #{siamese_forward.1} parent=1 // pred_check_branch
      %17 = sbr.rel (0) target = $region5
    $region4: #{siamese_forward.1} parent=1 // pred_region
      _
    $region5: #{siamese_forward.1} parent=1 // pred_fallthru
      _
    // Predicated region
    $region6: #{siamese_forward.1} parent=1 // pred_check
      _
    $region7: #{siamese_forward.1} parent=1 // pred_check_branch
      %19 = sbr.rel (0) target = $region9
    $region8: #{siamese_forward.1} parent=1 // pred_region
      _
    $region9: #{siamese_forward.1} parent=1 // pred_fallthru
      _
    // Predicated region
    $region10: #{siamese_forward.1} parent=1 // pred_check
      _
    $region11: #{siamese_forward.1} parent=1 // pred_check_branch
      %21 = sbr.rel (0) target = $region13
    $region12: #{siamese_forward.1} parent=1 // pred_region
      %s23 = ssub.s32 8192, 8192
      %24 = vsyncadd [#allocation3], %s23
      %s25 = sshll.u32 [#allocation2], 4
      %s26 = int_to_ptr.vmem [resolvable:$true] %s25
      %31 = dma.hbm_to_vmem [thread:$0]  %s2, 8192, %s26, [#allocation3], 64, 64, 4
    $region13: #{siamese_forward.1} parent=1 // pred_fallthru
      _
    // Predicated region
    $region14: #{siamese_forward.1} parent=1 // pred_check
      _
    $region15: #{siamese_forward.1} parent=1 // pred_check_branch
      %33 = sbr.rel (0) target = $region17
    $region16: #{siamese_forward.1} parent=1 // pred_region
      _
    $region17: #{siamese_forward.1} parent=1 // pred_fallthru
      _
    // Predicated region
    $region18: #{siamese_forward.1} parent=1 // pred_check
      _
    $region19: #{siamese_forward.1} parent=1 // pred_check_branch
      %35 = sbr.rel (0) target = $region21
    $region20: #{siamese_forward.1} parent=1 // pred_region
      _
    $region21: #{siamese_forward.1} parent=1 // pred_fallthru
      _
    // Predicated region
    $region22: #{siamese_forward.1} parent=1 // pred_check
      _
    $region23: #{siamese_forward.1} parent=1 // pred_check_branch
      %37 = sbr.rel (0) target = $region25
    $region24: #{siamese_forward.1} parent=1 // pred_region
      _
    $region25: #{siamese_forward.1} parent=1 // pred_fallthru
      _
    // Predicated region
    $region26: #{siamese_forward.1} parent=1 // pred_check
      _
    $region27: #{siamese_forward.1} parent=1 // pred_check_branch
      %39 = sbr.rel (0) target = $region29
    $region28: #{siamese_forward.1} parent=1 // pred_region
      %40 = dma.done [#allocation3], 8192
    $region29: #{siamese_forward.1} parent=1 // pred_fallthru
      _
    %v42 = vld [vmem:[#allocation2] sm:$0xf]
    %v43 = vld [vmem:[#allocation2 + $0x4] sm:$0xf]
    %v44 = vld [vmem:[#allocation2 + $0x8] sm:$0xf]
    %v45 = vld [vmem:[#allocation2 + $0xc] sm:$0xf]
    %v46 = vld [vmem:[#allocation2 + $0x10] sm:$0xf]
    %v47 = vld [vmem:[#allocation2 + $0x14] sm:$0xf]
    %v48 = vld [vmem:[#allocation2 + $0x18] sm:$0xf]
    %v49 = vld [vmem:[#allocation2 + $0x1c] sm:$0xf]
    %v50 = vld [vmem:[#allocation2 + $0x20] sm:$0xf]
    %v51 = vld [vmem:[#allocation2 + $0x24] sm:$0xf]
    %v52 = vld [vmem:[#allocation2 + $0x28] sm:$0xf]
    %v53 = vld [vmem:[#allocation2 + $0x2c] sm:$0xf]
    %v54 = vld [vmem:[#allocation2 + $0x30] sm:$0xf]
    %v55 = vld [vmem:[#allocation2 + $0x34] sm:$0xf]
    %v56 = vld [vmem:[#allocation2 + $0x38] sm:$0xf]
    %v57 = vld [vmem:[#allocation2 + $0x3c] sm:$0xf]
    %v58 = vld [vmem:[#allocation2 + $0x40] sm:$0xf]
    %v59 = vld [vmem:[#allocation2 + $0x44] sm:$0xf]
    %v60 = vld [vmem:[#allocation2 + $0x48] sm:$0xf]
    %v61 = vld [vmem:[#allocation2 + $0x4c] sm:$0xf]
    %v62 = vld [vmem:[#allocation2 + $0x50] sm:$0xf]
    %v63 = vld [vmem:[#allocation2 + $0x54] sm:$0xf]
    %v64 = vld [vmem:[#allocation2 + $0x58] sm:$0xf]
    %v65 = vld [vmem:[#allocation2 + $0x5c] sm:$0xf]
    %v66 = vld [vmem:[#allocation2 + $0x60] sm:$0xf]
    %v67 = vld [vmem:[#allocation2 + $0x64] sm:$0xf]
    %v68 = vld [vmem:[#allocation2 + $0x68] sm:$0xf]
    %v69 = vld [vmem:[#allocation2 + $0x6c] sm:$0xf]
    %v70 = vld [vmem:[#allocation2 + $0x70] sm:$0xf]
    %v71 = vld [vmem:[#allocation2 + $0x74] sm:$0xf]
    %v72 = vld [vmem:[#allocation2 + $0x78] sm:$0xf]
    %v73 = vld [vmem:[#allocation2 + $0x7c] sm:$0xf]
    %v74 = vld [vmem:[#allocation2 + $0x80] sm:$0xf]
    %v75 = vld [vmem:[#allocation2 + $0x84] sm:$0xf]
    %v76 = vld [vmem:[#allocation2 + $0x88] sm:$0xf]
    %v77 = vld [vmem:[#allocation2 + $0x8c] sm:$0xf]
    %v78 = vld [vmem:[#allocation2 + $0x90] sm:$0xf]
    %v79 = vld [vmem:[#allocation2 + $0x94] sm:$0xf]
    %v80 = vld [vmem:[#allocation2 + $0x98] sm:$0xf]
    %v81 = vld [vmem:[#allocation2 + $0x9c] sm:$0xf]
    %v82 = vld [vmem:[#allocation2 + $0xa0] sm:$0xf]
    %v83 = vld [vmem:[#allocation2 + $0xa4] sm:$0xf]
    %v84 = vld [vmem:[#allocation2 + $0xa8] sm:$0xf]
    %v85 = vld [vmem:[#allocation2 + $0xac] sm:$0xf]
    %v86 = vld [vmem:[#allocation2 + $0xb0] sm:$0xf]
    %v87 = vld [vmem:[#allocation2 + $0xb4] sm:$0xf]
    %v88 = vld [vmem:[#allocation2 + $0xb8] sm:$0xf]
    %v89 = vld [vmem:[#allocation2 + $0xbc] sm:$0xf]
    %v90 = vld [vmem:[#allocation2 + $0xc0] sm:$0xf]
    %v91 = vld [vmem:[#allocation2 + $0xc4] sm:$0xf]
    %v92 = vld [vmem:[#allocation2 + $0xc8] sm:$0xf]
    %v93 = vld [vmem:[#allocation2 + $0xcc] sm:$0xf]
    %v94 = vld [vmem:[#allocation2 + $0xd0] sm:$0xf]
    %v95 = vld [vmem:[#allocation2 + $0xd4] sm:$0xf]
    %v96 = vld [vmem:[#allocation2 + $0xd8] sm:$0xf]
    %v97 = vld [vmem:[#allocation2 + $0xdc] sm:$0xf]
    %v98 = vld [vmem:[#allocation2 + $0xe0] sm:$0xf]
    %v99 = vld [vmem:[#allocation2 + $0xe4] sm:$0xf]
    %v100 = vld [vmem:[#allocation2 + $0xe8] sm:$0xf]
    %v101 = vld [vmem:[#allocation2 + $0xec] sm:$0xf]
    %v102 = vld [vmem:[#allocation2 + $0xf0] sm:$0xf]
    %v103 = vld [vmem:[#allocation2 + $0xf4] sm:$0xf]
    %v104 = vld [vmem:[#allocation2 + $0xf8] sm:$0xf]
    %v105 = vld [vmem:[#allocation2 + $0xfc] sm:$0xf]
    %v106 = vld [vmem:[#allocation2 + $0x100] sm:$0xf]
    %v107 = vld [vmem:[#allocation2 + $0x104] sm:$0xf]
    %v108 = vld [vmem:[#allocation2 + $0x108] sm:$0xf]
    %v109 = vld [vmem:[#allocation2 + $0x10c] sm:$0xf]
    %v110 = vld [vmem:[#allocation2 + $0x110] sm:$0xf]
    %v111 = vld [vmem:[#allocation2 + $0x114] sm:$0xf]
    %v112 = vld [vmem:[#allocation2 + $0x118] sm:$0xf]
    %v113 = vld [vmem:[#allocation2 + $0x11c] sm:$0xf]
    %v114 = vld [vmem:[#allocation2 + $0x120] sm:$0xf]
    %v115 = vld [vmem:[#allocation2 + $0x124] sm:$0xf]
    %v116 = vld [vmem:[#allocation2 + $0x128] sm:$0xf]
    %v117 = vld [vmem:[#allocation2 + $0x12c] sm:$0xf]
    %v118 = vld [vmem:[#allocation2 + $0x130] sm:$0xf]
    %v119 = vld [vmem:[#allocation2 + $0x134] sm:$0xf]
    %v120 = vld [vmem:[#allocation2 + $0x138] sm:$0xf]
    %v121 = vld [vmem:[#allocation2 + $0x13c] sm:$0xf]
    %v122 = vld [vmem:[#allocation2 + $0x140] sm:$0xf]
    %v123 = vld [vmem:[#allocation2 + $0x144] sm:$0xf]
    %v124 = vld [vmem:[#allocation2 + $0x148] sm:$0xf]
    %v125 = vld [vmem:[#allocation2 + $0x14c] sm:$0xf]
    %v126 = vld [vmem:[#allocation2 + $0x150] sm:$0xf]
    %v127 = vld [vmem:[#allocation2 + $0x154] sm:$0xf]
    %v128 = vld [vmem:[#allocation2 + $0x158] sm:$0xf]
    %v129 = vld [vmem:[#allocation2 + $0x15c] sm:$0xf]
    %v130 = vld [vmem:[#allocation2 + $0x160] sm:$0xf]
    %v131 = vld [vmem:[#allocation2 + $0x164] sm:$0xf]
    %v132 = vld [vmem:[#allocation2 + $0x168] sm:$0xf]
    %v133 = vld [vmem:[#allocation2 + $0x16c] sm:$0xf]
    %v134 = vld [vmem:[#allocation2 + $0x170] sm:$0xf]
    %v135 = vld [vmem:[#allocation2 + $0x174] sm:$0xf]
    %v136 = vld [vmem:[#allocation2 + $0x178] sm:$0xf]
    %v137 = vld [vmem:[#allocation2 + $0x17c] sm:$0xf]
    %v138 = vld [vmem:[#allocation2 + $0x180] sm:$0xf]
    %v139 = vld [vmem:[#allocation2 + $0x184] sm:$0xf]
    %v140 = vld [vmem:[#allocation2 + $0x188] sm:$0xf]
    %v141 = vld [vmem:[#allocation2 + $0x18c] sm:$0xf]
    %v142 = vld [vmem:[#allocation2 + $0x190] sm:$0xf]
    %v143 = vld [vmem:[#allocation2 + $0x194] sm:$0xf]
    %v144 = vld [vmem:[#allocation2 + $0x198] sm:$0xf]
    %v145 = vld [vmem:[#allocation2 + $0x19c] sm:$0xf]
    %v146 = vld [vmem:[#allocation2 + $0x1a0] sm:$0xf]
    %v147 = vld [vmem:[#allocation2 + $0x1a4] sm:$0xf]
    %v148 = vld [vmem:[#allocation2 + $0x1a8] sm:$0xf]
    %v149 = vld [vmem:[#allocation2 + $0x1ac] sm:$0xf]
    %v150 = vld [vmem:[#allocation2 + $0x1b0] sm:$0xf]
    %v151 = vld [vmem:[#allocation2 + $0x1b4] sm:$0xf]
    %v152 = vld [vmem:[#allocation2 + $0x1b8] sm:$0xf]
    %v153 = vld [vmem:[#allocation2 + $0x1bc] sm:$0xf]
    %v154 = vld [vmem:[#allocation2 + $0x1c0] sm:$0xf]
    %v155 = vld [vmem:[#allocation2 + $0x1c4] sm:$0xf]
    %v156 = vld [vmem:[#allocation2 + $0x1c8] sm:$0xf]
    %v157 = vld [vmem:[#allocation2 + $0x1cc] sm:$0xf]
    %v158 = vld [vmem:[#allocation2 + $0x1d0] sm:$0xf]
    %v159 = vld [vmem:[#allocation2 + $0x1d4] sm:$0xf]
    %v160 = vld [vmem:[#allocation2 + $0x1d8] sm:$0xf]
    %v161 = vld [vmem:[#allocation2 + $0x1dc] sm:$0xf]
    %v162 = vld [vmem:[#allocation2 + $0x1e0] sm:$0xf]
    %v163 = vld [vmem:[#allocation2 + $0x1e4] sm:$0xf]
    %v164 = vld [vmem:[#allocation2 + $0x1e8] sm:$0xf]
    %v165 = vld [vmem:[#allocation2 + $0x1ec] sm:$0xf]
    %v166 = vld [vmem:[#allocation2 + $0x1f0] sm:$0xf]
    %v167 = vld [vmem:[#allocation2 + $0x1f4] sm:$0xf]
    %v168 = vld [vmem:[#allocation2 + $0x1f8] sm:$0xf]
    %v169 = vld [vmem:[#allocation2 + $0x1fc] sm:$0xf]
    %v170 = vld [vmem:[%s3] sm:$0x1]
    %v171 = vld [vmem:[%s4] sm:$0xf]
    %v172 = vld [vmem:[%s4 + $0x4] sm:$0xf]
    %v173 = vld [vmem:[%s4 + $0x8] sm:$0xf]
    %v174 = vld [vmem:[%s4 + $0xc] sm:$0xf]
    %v175 = vld [vmem:[%s4 + $0x10] sm:$0xf]
    %v176 = vld [vmem:[%s4 + $0x14] sm:$0xf]
    %v177 = vld [vmem:[%s4 + $0x18] sm:$0xf]
    %v178 = vld [vmem:[%s4 + $0x1c] sm:$0xf]
    %v179 = vld [vmem:[%s4 + $0x20] sm:$0xf]
    %v180 = vld [vmem:[%s4 + $0x24] sm:$0xf]
    %v181 = vld [vmem:[%s4 + $0x28] sm:$0xf]
    %v182 = vld [vmem:[%s4 + $0x2c] sm:$0xf]
    %v183 = vld [vmem:[%s4 + $0x30] sm:$0xf]
    %v184 = vld [vmem:[%s4 + $0x34] sm:$0xf]
    %v185 = vld [vmem:[%s4 + $0x38] sm:$0xf]
    %v186 = vld [vmem:[%s4 + $0x3c] sm:$0xf]
    %v187 = vld [vmem:[%s5] sm:$0x1]
    %v188 = vld [vmem:[%s0] sm:$0xff]
    %v189 = vld [vmem:[%s0 + $0x8] sm:$0xff]
    %v190 = vld [vmem:[%s0 + $0x10] sm:$0xff]
    %v191 = vld [vmem:[%s0 + $0x18] sm:$0xff]
    %v192 = vld [vmem:[%s0 + $0x20] sm:$0xff]
    %v193 = vld [vmem:[%s0 + $0x28] sm:$0xff]
    %v194 = vld [vmem:[%s0 + $0x30] sm:$0xff]
    %v195 = vld [vmem:[%s0 + $0x38] sm:$0xff]
    %v204 = vcombine.low %v188, %v190
    %v205 = vcombine.high %v188, %v190
    %v206 = vcombine.low %v192, %v194
    %v207 = vcombine.high %v192, %v194
    %v209 = vunpack.c.l.s4 1983009808
    %v210 = vunpack.c.0.s8 %v209
    %v211 = vlaneseq
    %v212 = vshrl.u32 %v211, 7
    %v213 = vsub.s32 %v210, %v212
    %v214 = vrot.slane %v204, %v213
    %v216 = vunpack.c.l.s4 1983009808
    %v217 = vunpack.c.0.s8 %v216
    %v218 = vlaneseq
    %v219 = vshrl.u32 %v218, 7
    %v220 = vsub.s32 %v217, %v219
    %v221 = vrot.slane %v205, %v220
    %v223 = vunpack.c.l.s4 1983009808
    %v224 = vunpack.c.0.s8 %v223
    %v225 = vlaneseq
    %v226 = vshrl.u32 %v225, 7
    %v227 = vsub.s32 %v224, %v226
    %v228 = vrot.slane %v206, %v227
    %v230 = vunpack.c.l.s4 1983009808
    %v231 = vunpack.c.0.s8 %v230
    %v232 = vlaneseq
    %v233 = vshrl.u32 %v232, 7
    %v234 = vsub.s32 %v231, %v233
    %v235 = vrot.slane %v207, %v234
    %v236 = vcombine.low %v214, %v228
    %v237 = vcombine.high %v214, %v228
    %v238 = vcombine.low %v221, %v235
    %v239 = vcombine.high %v221, %v235
    %v240 = vcombine.low %v189, %v191
    %v241 = vcombine.high %v189, %v191
    %v242 = vcombine.low %v193, %v195
    %v243 = vcombine.high %v193, %v195
    %v245 = vunpack.c.l.s4 1983009808
    %v246 = vunpack.c.0.s8 %v245
    %v247 = vlaneseq
    %v248 = vshrl.u32 %v247, 7
    %v249 = vsub.s32 %v246, %v248
    %v250 = vrot.slane %v240, %v249
    %v252 = vunpack.c.l.s4 1983009808
    %v253 = vunpack.c.0.s8 %v252
    %v254 = vlaneseq
    %v255 = vshrl.u32 %v254, 7
    %v256 = vsub.s32 %v253, %v255
    %v257 = vrot.slane %v241, %v256
    %v259 = vunpack.c.l.s4 1983009808
    %v260 = vunpack.c.0.s8 %v259
    %v261 = vlaneseq
    %v262 = vshrl.u32 %v261, 7
    %v263 = vsub.s32 %v260, %v262
    %v264 = vrot.slane %v242, %v263
    %v266 = vunpack.c.l.s4 1983009808
    %v267 = vunpack.c.0.s8 %v266
    %v268 = vlaneseq
    %v269 = vshrl.u32 %v268, 7
    %v270 = vsub.s32 %v267, %v269
    %v271 = vrot.slane %v243, %v270
    %v272 = vcombine.low %v250, %v264
    %v273 = vcombine.high %v250, %v264
    %v274 = vcombine.low %v257, %v271
    %v275 = vcombine.high %v257, %v271
    %v284 = vpack.c.bf16 %v236, %v236
    %v285 = vpack.c.bf16 %v237, %v237
    %v286 = vpack.c.bf16 %v238, %v238
    %v287 = vpack.c.bf16 %v239, %v239
    %v288 = vpack.c.bf16 %v272, %v272
    %v289 = vpack.c.bf16 %v273, %v273
    %v290 = vpack.c.bf16 %v274, %v274
    %v291 = vpack.c.bf16 %v275, %v275
    %v293 = vlaneseq
    %v294 = vshrl.u32 %v293, 7
    %v295 = vsub.s32 0, %v294
    %v296 = vrot.slane %v170, %v295
    %v426 = vunpack.c.l.b16 %v42
    %v427 = vunpack.c.l.b16 %v43
    %v428 = vunpack.c.l.b16 %v44
    %v429 = vunpack.c.l.b16 %v45
    %v430 = vunpack.c.l.b16 %v46
    %v431 = vunpack.c.l.b16 %v47
    %v432 = vunpack.c.l.b16 %v48
    %v433 = vunpack.c.l.b16 %v49
    %v434 = vunpack.c.l.b16 %v50
    %v435 = vunpack.c.l.b16 %v51
    %v436 = vunpack.c.l.b16 %v52
    %v437 = vunpack.c.l.b16 %v53
    %v438 = vunpack.c.l.b16 %v54
    %v439 = vunpack.c.l.b16 %v55
    %v440 = vunpack.c.l.b16 %v56
    %v441 = vunpack.c.l.b16 %v57
    %v442 = vunpack.c.l.b16 %v58
    %v443 = vunpack.c.l.b16 %v59
    %v444 = vunpack.c.l.b16 %v60
    %v445 = vunpack.c.l.b16 %v61
    %v446 = vunpack.c.l.b16 %v62
    %v447 = vunpack.c.l.b16 %v63
    %v448 = vunpack.c.l.b16 %v64
    %v449 = vunpack.c.l.b16 %v65
    %v450 = vunpack.c.l.b16 %v66
    %v451 = vunpack.c.l.b16 %v67
    %v452 = vunpack.c.l.b16 %v68
    %v453 = vunpack.c.l.b16 %v69
    %v454 = vunpack.c.l.b16 %v70
    %v455 = vunpack.c.l.b16 %v71
    %v456 = vunpack.c.l.b16 %v72
    %v457 = vunpack.c.l.b16 %v73
    %v458 = vunpack.c.l.b16 %v74
    %v459 = vunpack.c.l.b16 %v75
    %v460 = vunpack.c.l.b16 %v76
    %v461 = vunpack.c.l.b16 %v77
    %v462 = vunpack.c.l.b16 %v78
    %v463 = vunpack.c.l.b16 %v79
    %v464 = vunpack.c.l.b16 %v80
    %v465 = vunpack.c.l.b16 %v81
    %v466 = vunpack.c.l.b16 %v82
    %v467 = vunpack.c.l.b16 %v83
    %v468 = vunpack.c.l.b16 %v84
    %v469 = vunpack.c.l.b16 %v85
    %v470 = vunpack.c.l.b16 %v86
    %v471 = vunpack.c.l.b16 %v87
    %v472 = vunpack.c.l.b16 %v88
    %v473 = vunpack.c.l.b16 %v89
    %v474 = vunpack.c.l.b16 %v90
    %v475 = vunpack.c.l.b16 %v91
    %v476 = vunpack.c.l.b16 %v92
    %v477 = vunpack.c.l.b16 %v93
    %v478 = vunpack.c.l.b16 %v94
    %v479 = vunpack.c.l.b16 %v95
    %v480 = vunpack.c.l.b16 %v96
    %v481 = vunpack.c.l.b16 %v97
    %v482 = vunpack.c.l.b16 %v98
    %v483 = vunpack.c.l.b16 %v99
    %v484 = vunpack.c.l.b16 %v100
    %v485 = vunpack.c.l.b16 %v101
    %v486 = vunpack.c.l.b16 %v102
    %v487 = vunpack.c.l.b16 %v103
    %v488 = vunpack.c.l.b16 %v104
    %v489 = vunpack.c.l.b16 %v105
    %v490 = vunpack.c.l.b16 %v106
    %v491 = vunpack.c.l.b16 %v107
    %v492 = vunpack.c.l.b16 %v108
    %v493 = vunpack.c.l.b16 %v109
    %v494 = vunpack.c.l.b16 %v110
    %v495 = vunpack.c.l.b16 %v111
    %v496 = vunpack.c.l.b16 %v112
    %v497 = vunpack.c.l.b16 %v113
    %v498 = vunpack.c.l.b16 %v114
    %v499 = vunpack.c.l.b16 %v115
    %v500 = vunpack.c.l.b16 %v116
    %v501 = vunpack.c.l.b16 %v117
    %v502 = vunpack.c.l.b16 %v118
    %v503 = vunpack.c.l.b16 %v119
    %v504 = vunpack.c.l.b16 %v120
    %v505 = vunpack.c.l.b16 %v121
    %v506 = vunpack.c.l.b16 %v122
    %v507 = vunpack.c.l.b16 %v123
    %v508 = vunpack.c.l.b16 %v124
    %v509 = vunpack.c.l.b16 %v125
    %v510 = vunpack.c.l.b16 %v126
    %v511 = vunpack.c.l.b16 %v127
    %v512 = vunpack.c.l.b16 %v128
    %v513 = vunpack.c.l.b16 %v129
    %v514 = vunpack.c.l.b16 %v130
    %v515 = vunpack.c.l.b16 %v131
    %v516 = vunpack.c.l.b16 %v132
    %v517 = vunpack.c.l.b16 %v133
    %v518 = vunpack.c.l.b16 %v134
    %v519 = vunpack.c.l.b16 %v135
    %v520 = vunpack.c.l.b16 %v136
    %v521 = vunpack.c.l.b16 %v137
    %v522 = vunpack.c.l.b16 %v138
    %v523 = vunpack.c.l.b16 %v139
    %v524 = vunpack.c.l.b16 %v140
    %v525 = vunpack.c.l.b16 %v141
    %v526 = vunpack.c.l.b16 %v142
    %v527 = vunpack.c.l.b16 %v143
    %v528 = vunpack.c.l.b16 %v144
    %v529 = vunpack.c.l.b16 %v145
    %v530 = vunpack.c.l.b16 %v146
    %v531 = vunpack.c.l.b16 %v147
    %v532 = vunpack.c.l.b16 %v148
    %v533 = vunpack.c.l.b16 %v149
    %v534 = vunpack.c.l.b16 %v150
    %v535 = vunpack.c.l.b16 %v151
    %v536 = vunpack.c.l.b16 %v152
    %v537 = vunpack.c.l.b16 %v153
    %v538 = vunpack.c.l.b16 %v154
    %v539 = vunpack.c.l.b16 %v155
    %v540 = vunpack.c.l.b16 %v156
    %v541 = vunpack.c.l.b16 %v157
    %v542 = vunpack.c.l.b16 %v158
    %v543 = vunpack.c.l.b16 %v159
    %v544 = vunpack.c.l.b16 %v160
    %v545 = vunpack.c.l.b16 %v161
    %v546 = vunpack.c.l.b16 %v162
    %v547 = vunpack.c.l.b16 %v163
    %v548 = vunpack.c.l.b16 %v164
    %v549 = vunpack.c.l.b16 %v165
    %v550 = vunpack.c.l.b16 %v166
    %v551 = vunpack.c.l.b16 %v167
    %v552 = vunpack.c.l.b16 %v168
    %v553 = vunpack.c.l.b16 %v169
    %v554 = vpack.c.b16 %v427, %v426
    %v555 = vpack.c.b16 %v429, %v428
    %v556 = vpack.c.b16 %v431, %v430
    %v557 = vpack.c.b16 %v433, %v432
    %v558 = vpack.c.b16 %v435, %v434
    %v559 = vpack.c.b16 %v437, %v436
    %v560 = vpack.c.b16 %v439, %v438
    %v561 = vpack.c.b16 %v441, %v440
    %v562 = vpack.c.b16 %v443, %v442
    %v563 = vpack.c.b16 %v445, %v444
    %v564 = vpack.c.b16 %v447, %v446
    %v565 = vpack.c.b16 %v449, %v448
    %v566 = vpack.c.b16 %v451, %v450
    %v567 = vpack.c.b16 %v453, %v452
    %v568 = vpack.c.b16 %v455, %v454
    %v569 = vpack.c.b16 %v457, %v456
    %v570 = vpack.c.b16 %v459, %v458
    %v571 = vpack.c.b16 %v461, %v460
    %v572 = vpack.c.b16 %v463, %v462
    %v573 = vpack.c.b16 %v465, %v464
    %v574 = vpack.c.b16 %v467, %v466
    %v575 = vpack.c.b16 %v469, %v468
    %v576 = vpack.c.b16 %v471, %v470
    %v577 = vpack.c.b16 %v473, %v472
    %v578 = vpack.c.b16 %v475, %v474
    %v579 = vpack.c.b16 %v477, %v476
    %v580 = vpack.c.b16 %v479, %v478
    %v581 = vpack.c.b16 %v481, %v480
    %v582 = vpack.c.b16 %v483, %v482
    %v583 = vpack.c.b16 %v485, %v484
    %v584 = vpack.c.b16 %v487, %v486
    %v585 = vpack.c.b16 %v489, %v488
    %v586 = vpack.c.b16 %v491, %v490
    %v587 = vpack.c.b16 %v493, %v492
    %v588 = vpack.c.b16 %v495, %v494
    %v589 = vpack.c.b16 %v497, %v496
    %v590 = vpack.c.b16 %v499, %v498
    %v591 = vpack.c.b16 %v501, %v500
    %v592 = vpack.c.b16 %v503, %v502
    %v593 = vpack.c.b16 %v505, %v504
    %v594 = vpack.c.b16 %v507, %v506
    %v595 = vpack.c.b16 %v509, %v508
    %v596 = vpack.c.b16 %v511, %v510
    %v597 = vpack.c.b16 %v513, %v512
    %v598 = vpack.c.b16 %v515, %v514
    %v599 = vpack.c.b16 %v517, %v516
    %v600 = vpack.c.b16 %v519, %v518
    %v601 = vpack.c.b16 %v521, %v520
    %v602 = vpack.c.b16 %v523, %v522
    %v603 = vpack.c.b16 %v525, %v524
    %v604 = vpack.c.b16 %v527, %v526
    %v605 = vpack.c.b16 %v529, %v528
    %v606 = vpack.c.b16 %v531, %v530
    %v607 = vpack.c.b16 %v533, %v532
    %v608 = vpack.c.b16 %v535, %v534
    %v609 = vpack.c.b16 %v537, %v536
    %v610 = vpack.c.b16 %v539, %v538
    %v611 = vpack.c.b16 %v541, %v540
    %v612 = vpack.c.b16 %v543, %v542
    %v613 = vpack.c.b16 %v545, %v544
    %v614 = vpack.c.b16 %v547, %v546
    %v615 = vpack.c.b16 %v549, %v548
    %v616 = vpack.c.b16 %v551, %v550
    %v617 = vpack.c.b16 %v553, %v552
    %682 = vmatprep.subr.bf16.mxu0 0
    %683 = vmatpush1.bf16.msra.mxu0 %v554
    %684 = vmatprep.subr.bf16.mxu0 0
    %685 = vmatpush1.bf16.msra.mxu0 %v555
    %686 = vmatprep.subr.bf16.mxu0 0
    %687 = vmatpush1.bf16.msra.mxu0 %v556
    %688 = vmatprep.subr.bf16.mxu0 0
    %689 = vmatpush1.bf16.msra.mxu0 %v557
    %690 = vmatprep.subr.bf16.mxu0 0
    %691 = vmatpush1.bf16.msra.mxu0 %v558
    %692 = vmatprep.subr.bf16.mxu0 0
    %693 = vmatpush1.bf16.msra.mxu0 %v559
    %694 = vmatprep.subr.bf16.mxu0 0
    %695 = vmatpush1.bf16.msra.mxu0 %v560
    %696 = vmatprep.subr.bf16.mxu0 0
    %697 = vmatpush1.bf16.msra.mxu0 %v561
    %698 = vmatprep.subr.bf16.mxu0 0
    %699 = vmatpush1.bf16.msra.mxu0 %v562
    %700 = vmatprep.subr.bf16.mxu0 0
    %701 = vmatpush1.bf16.msra.mxu0 %v563
    %702 = vmatprep.subr.bf16.mxu0 0
    %703 = vmatpush1.bf16.msra.mxu0 %v564
    %704 = vmatprep.subr.bf16.mxu0 0
    %705 = vmatpush1.bf16.msra.mxu0 %v565
    %706 = vmatprep.subr.bf16.mxu0 0
    %707 = vmatpush1.bf16.msra.mxu0 %v566
    %708 = vmatprep.subr.bf16.mxu0 0
    %709 = vmatpush1.bf16.msra.mxu0 %v567
    %710 = vmatprep.subr.bf16.mxu0 0
    %711 = vmatpush1.bf16.msra.mxu0 %v568
    %712 = vmatprep.subr.bf16.mxu0 0
    %713 = vmatpush1.bf16.msra.mxu0 %v569
    %714 = vmatprep.mubr.bf16.mxu0 %v285
    %715 = vmatmul.mubr.bf16.gmra.mrb[0].mxu0 %v284
    %v716 = vpop.f32.mrb[0].mxu0
    %v717 = vadd.f32 %v296, %v716
    %v718 = vpop.f32.mrb[0].mxu0
    %v719 = vpop.f32.mrb[0].mxu0
    %v720 = vpop.f32.mrb[0].mxu0
    %721 = vdwg.mxu0
    %722 = vmatprep.subr.bf16.mxu0 0
    %723 = vmatpush1.bf16.msra.mxu0 %v570
    %724 = vmatprep.subr.bf16.mxu0 0
    %725 = vmatpush1.bf16.msra.mxu0 %v571
    %726 = vmatprep.subr.bf16.mxu0 0
    %727 = vmatpush1.bf16.msra.mxu0 %v572
    %728 = vmatprep.subr.bf16.mxu0 0
    %729 = vmatpush1.bf16.msra.mxu0 %v573
    %730 = vmatprep.subr.bf16.mxu0 0
    %731 = vmatpush1.bf16.msra.mxu0 %v574
    %732 = vmatprep.subr.bf16.mxu0 0
    %733 = vmatpush1.bf16.msra.mxu0 %v575
    %734 = vmatprep.subr.bf16.mxu0 0
    %735 = vmatpush1.bf16.msra.mxu0 %v576
    %736 = vmatprep.subr.bf16.mxu0 0
    %737 = vmatpush1.bf16.msra.mxu0 %v577
    %738 = vmatprep.subr.bf16.mxu0 0
    %739 = vmatpush1.bf16.msra.mxu0 %v578
    %740 = vmatprep.subr.bf16.mxu0 0
    %741 = vmatpush1.bf16.msra.mxu0 %v579
    %742 = vmatprep.subr.bf16.mxu0 0
    %743 = vmatpush1.bf16.msra.mxu0 %v580
    %744 = vmatprep.subr.bf16.mxu0 0
    %745 = vmatpush1.bf16.msra.mxu0 %v581
    %746 = vmatprep.subr.bf16.mxu0 0
    %747 = vmatpush1.bf16.msra.mxu0 %v582
    %748 = vmatprep.subr.bf16.mxu0 0
    %749 = vmatpush1.bf16.msra.mxu0 %v583
    %750 = vmatprep.subr.bf16.mxu0 0
    %751 = vmatpush1.bf16.msra.mxu0 %v584
    %752 = vmatprep.subr.bf16.mxu0 0
    %753 = vmatpush1.bf16.msra.mxu0 %v585
    %754 = vmatprep.mubr.bf16.mxu0 %v287
    %755 = vmatmul.mubr.bf16.gmra.mrb[0].mxu0 %v286
    %v756 = vpop.f32.mrb[0].mxu0
    %v757 = vadd.f32 %v717, %v756
    %v758 = vpop.f32.mrb[0].mxu0
    %v759 = vpop.f32.mrb[0].mxu0
    %v760 = vpop.f32.mrb[0].mxu0
    %761 = vdwg.mxu0
    %762 = vmatprep.subr.bf16.mxu0 0
    %763 = vmatpush1.bf16.msra.mxu0 %v586
    %764 = vmatprep.subr.bf16.mxu0 0
    %765 = vmatpush1.bf16.msra.mxu0 %v587
    %766 = vmatprep.subr.bf16.mxu0 0
    %767 = vmatpush1.bf16.msra.mxu0 %v588
    %768 = vmatprep.subr.bf16.mxu0 0
    %769 = vmatpush1.bf16.msra.mxu0 %v589
    %770 = vmatprep.subr.bf16.mxu0 0
    %771 = vmatpush1.bf16.msra.mxu0 %v590
    %772 = vmatprep.subr.bf16.mxu0 0
    %773 = vmatpush1.bf16.msra.mxu0 %v591
    %774 = vmatprep.subr.bf16.mxu0 0
    %775 = vmatpush1.bf16.msra.mxu0 %v592
    %776 = vmatprep.subr.bf16.mxu0 0
    %777 = vmatpush1.bf16.msra.mxu0 %v593
    %778 = vmatprep.subr.bf16.mxu0 0
    %779 = vmatpush1.bf16.msra.mxu0 %v594
    %780 = vmatprep.subr.bf16.mxu0 0
    %781 = vmatpush1.bf16.msra.mxu0 %v595
    %782 = vmatprep.subr.bf16.mxu0 0
    %783 = vmatpush1.bf16.msra.mxu0 %v596
    %784 = vmatprep.subr.bf16.mxu0 0
    %785 = vmatpush1.bf16.msra.mxu0 %v597
    %786 = vmatprep.subr.bf16.mxu0 0
    %787 = vmatpush1.bf16.msra.mxu0 %v598
    %788 = vmatprep.subr.bf16.mxu0 0
    %789 = vmatpush1.bf16.msra.mxu0 %v599
    %790 = vmatprep.subr.bf16.mxu0 0
    %791 = vmatpush1.bf16.msra.mxu0 %v600
    %792 = vmatprep.subr.bf16.mxu0 0
    %793 = vmatpush1.bf16.msra.mxu0 %v601
    %794 = vmatprep.mubr.bf16.mxu0 %v289
    %795 = vmatmul.mubr.bf16.gmra.mrb[0].mxu0 %v288
    %v796 = vpop.f32.mrb[0].mxu0
    %v797 = vadd.f32 %v757, %v796
    %v798 = vpop.f32.mrb[0].mxu0
    %v799 = vpop.f32.mrb[0].mxu0
    %v800 = vpop.f32.mrb[0].mxu0
    %801 = vdwg.mxu0
    %802 = vmatprep.subr.bf16.mxu0 0
    %803 = vmatpush1.bf16.msra.mxu0 %v602
    %804 = vmatprep.subr.bf16.mxu0 0
    %805 = vmatpush1.bf16.msra.mxu0 %v603
    %806 = vmatprep.subr.bf16.mxu0 0
    %807 = vmatpush1.bf16.msra.mxu0 %v604
    %808 = vmatprep.subr.bf16.mxu0 0
    %809 = vmatpush1.bf16.msra.mxu0 %v605
    %810 = vmatprep.subr.bf16.mxu0 0
    %811 = vmatpush1.bf16.msra.mxu0 %v606
    %812 = vmatprep.subr.bf16.mxu0 0
    %813 = vmatpush1.bf16.msra.mxu0 %v607
    %814 = vmatprep.subr.bf16.mxu0 0
    %815 = vmatpush1.bf16.msra.mxu0 %v608
    %816 = vmatprep.subr.bf16.mxu0 0
    %817 = vmatpush1.bf16.msra.mxu0 %v609
    %818 = vmatprep.subr.bf16.mxu0 0
    %819 = vmatpush1.bf16.msra.mxu0 %v610
    %820 = vmatprep.subr.bf16.mxu0 0
    %821 = vmatpush1.bf16.msra.mxu0 %v611
    %822 = vmatprep.subr.bf16.mxu0 0
    %823 = vmatpush1.bf16.msra.mxu0 %v612
    %824 = vmatprep.subr.bf16.mxu0 0
    %825 = vmatpush1.bf16.msra.mxu0 %v613
    %826 = vmatprep.subr.bf16.mxu0 0
    %827 = vmatpush1.bf16.msra.mxu0 %v614
    %828 = vmatprep.subr.bf16.mxu0 0
    %829 = vmatpush1.bf16.msra.mxu0 %v615
    %830 = vmatprep.subr.bf16.mxu0 0
    %831 = vmatpush1.bf16.msra.mxu0 %v616
    %832 = vmatprep.subr.bf16.mxu0 0
    %833 = vmatpush1.bf16.msra.mxu0 %v617
    %834 = vmatprep.mubr.bf16.mxu0 %v291
    %835 = vmatmul.mubr.bf16.gmra.mrb[0].mxu0 %v290
    %v836 = vpop.f32.mrb[0].mxu0
    %v837 = vadd.f32 %v797, %v836
    %v838 = vpop.f32.mrb[0].mxu0
    %v839 = vpop.f32.mrb[0].mxu0
    %v840 = vpop.f32.mrb[0].mxu0
    %841 = vdwg.mxu0
    %v842 = vmax.f32 %v837, 0.0
    %v843 = vpack.c.bf16 %v842, %v842
    %v845 = vlaneseq
    %v846 = vshrl.u32 %v845, 7
    %v847 = vsub.s32 0, %v846
    %v848 = vrot.slane %v187, %v847
    %v866 = vunpack.c.l.b16 %v171
    %v867 = vunpack.c.l.b16 %v172
    %v868 = vunpack.c.l.b16 %v173
    %v869 = vunpack.c.l.b16 %v174
    %v870 = vunpack.c.l.b16 %v175
    %v871 = vunpack.c.l.b16 %v176
    %v872 = vunpack.c.l.b16 %v177
    %v873 = vunpack.c.l.b16 %v178
    %v874 = vunpack.c.l.b16 %v179
    %v875 = vunpack.c.l.b16 %v180
    %v876 = vunpack.c.l.b16 %v181
    %v877 = vunpack.c.l.b16 %v182
    %v878 = vunpack.c.l.b16 %v183
    %v879 = vunpack.c.l.b16 %v184
    %v880 = vunpack.c.l.b16 %v185
    %v881 = vunpack.c.l.b16 %v186
    %v882 = vpack.c.b16 %v867, %v866
    %v883 = vpack.c.b16 %v869, %v868
    %v884 = vpack.c.b16 %v871, %v870
    %v885 = vpack.c.b16 %v873, %v872
    %v886 = vpack.c.b16 %v875, %v874
    %v887 = vpack.c.b16 %v877, %v876
    %v888 = vpack.c.b16 %v879, %v878
    %v889 = vpack.c.b16 %v881, %v880
    %898 = vmatprep.subr.bf16.mxu0 0
    %899 = vmatpush1.bf16.msra.mxu0 %v882
    %900 = vmatprep.subr.bf16.mxu0 0
    %901 = vmatpush1.bf16.msra.mxu0 %v883
    %902 = vmatprep.subr.bf16.mxu0 0
    %903 = vmatpush1.bf16.msra.mxu0 %v884
    %904 = vmatprep.subr.bf16.mxu0 0
    %905 = vmatpush1.bf16.msra.mxu0 %v885
    %906 = vmatprep.subr.bf16.mxu0 0
    %907 = vmatpush1.bf16.msra.mxu0 %v886
    %908 = vmatprep.subr.bf16.mxu0 0
    %909 = vmatpush1.bf16.msra.mxu0 %v887
    %910 = vmatprep.subr.bf16.mxu0 0
    %911 = vmatpush1.bf16.msra.mxu0 %v888
    %912 = vmatprep.subr.bf16.mxu0 0
    %913 = vmatpush1.bf16.msra.mxu0 %v889
    %914 = vmatprep.subr.bf16.mxu0 0
    %915 = vmatpush1.bf16.msra.mxu0 0
    %916 = vmatprep.subr.bf16.mxu0 0
    %917 = vmatpush1.bf16.msra.mxu0 0
    %918 = vmatprep.subr.bf16.mxu0 0
    %919 = vmatpush1.bf16.msra.mxu0 0
    %920 = vmatprep.subr.bf16.mxu0 0
    %921 = vmatpush1.bf16.msra.mxu0 0
    %922 = vmatprep.subr.bf16.mxu0 0
    %923 = vmatpush1.bf16.msra.mxu0 0
    %924 = vmatprep.subr.bf16.mxu0 0
    %925 = vmatpush1.bf16.msra.mxu0 0
    %926 = vmatprep.subr.bf16.mxu0 0
    %927 = vmatpush1.bf16.msra.mxu0 0
    %928 = vmatprep.subr.bf16.mxu0 0
    %929 = vmatpush1.bf16.msra.mxu0 0
    %930 = vmatprep.mubr.bf16.mxu0 0
    %931 = vmatmul.mubr.bf16.gmra.mrb[0].mxu0 %v843
    %v932 = vpop.f32.mrb[0].mxu0
    %v933 = vadd.f32 %v848, %v932
    %v934 = vpop.f32.mrb[0].mxu0
    %v935 = vpop.f32.mrb[0].mxu0
    %v936 = vpop.f32.mrb[0].mxu0
    %937 = vdwg.mxu0
    %938 = vst [vmem:[#allocation5] sm:$0xff] %v933
    %v939 = vld [vmem:[%s1] sm:$0xff]
    %v940 = vld [vmem:[%s1 + $0x8] sm:$0xff]
    %v941 = vld [vmem:[%s1 + $0x10] sm:$0xff]
    %v942 = vld [vmem:[%s1 + $0x18] sm:$0xff]
    %v943 = vld [vmem:[%s1 + $0x20] sm:$0xff]
    %v944 = vld [vmem:[%s1 + $0x28] sm:$0xff]
    %v945 = vld [vmem:[%s1 + $0x30] sm:$0xff]
    %v946 = vld [vmem:[%s1 + $0x38] sm:$0xff]
    %v955 = vcombine.low %v939, %v941
    %v956 = vcombine.high %v939, %v941
    %v957 = vcombine.low %v943, %v945
    %v958 = vcombine.high %v943, %v945
    %v960 = vunpack.c.l.s4 1983009808
    %v961 = vunpack.c.0.s8 %v960
    %v962 = vlaneseq
    %v963 = vshrl.u32 %v962, 7
    %v964 = vsub.s32 %v961, %v963
    %v965 = vrot.slane %v955, %v964
    %v967 = vunpack.c.l.s4 1983009808
    %v968 = vunpack.c.0.s8 %v967
    %v969 = vlaneseq
    %v970 = vshrl.u32 %v969, 7
    %v971 = vsub.s32 %v968, %v970
    %v972 = vrot.slane %v956, %v971
    %v974 = vunpack.c.l.s4 1983009808
    %v975 = vunpack.c.0.s8 %v974
    %v976 = vlaneseq
    %v977 = vshrl.u32 %v976, 7
    %v978 = vsub.s32 %v975, %v977
    %v979 = vrot.slane %v957, %v978
    %v981 = vunpack.c.l.s4 1983009808
    %v982 = vunpack.c.0.s8 %v981
    %v983 = vlaneseq
    %v984 = vshrl.u32 %v983, 7
    %v985 = vsub.s32 %v982, %v984
    %v986 = vrot.slane %v958, %v985
    %v987 = vcombine.low %v965, %v979
    %v988 = vcombine.high %v965, %v979
    %v989 = vcombine.low %v972, %v986
    %v990 = vcombine.high %v972, %v986
    %v991 = vcombine.low %v940, %v942
    %v992 = vcombine.high %v940, %v942
    %v993 = vcombine.low %v944, %v946
    %v994 = vcombine.high %v944, %v946
    %v996 = vunpack.c.l.s4 1983009808
    %v997 = vunpack.c.0.s8 %v996
    %v998 = vlaneseq
    %v999 = vshrl.u32 %v998, 7
    %v1000 = vsub.s32 %v997, %v999
    %v1001 = vrot.slane %v991, %v1000
    %v1003 = vunpack.c.l.s4 1983009808
    %v1004 = vunpack.c.0.s8 %v1003
    %v1005 = vlaneseq
    %v1006 = vshrl.u32 %v1005, 7
    %v1007 = vsub.s32 %v1004, %v1006
    %v1008 = vrot.slane %v992, %v1007
    %v1010 = vunpack.c.l.s4 1983009808
    %v1011 = vunpack.c.0.s8 %v1010
    %v1012 = vlaneseq
    %v1013 = vshrl.u32 %v1012, 7
    %v1014 = vsub.s32 %v1011, %v1013
    %v1015 = vrot.slane %v993, %v1014
    %v1017 = vunpack.c.l.s4 1983009808
    %v1018 = vunpack.c.0.s8 %v1017
    %v1019 = vlaneseq
    %v1020 = vshrl.u32 %v1019, 7
    %v1021 = vsub.s32 %v1018, %v1020
    %v1022 = vrot.slane %v994, %v1021
    %v1023 = vcombine.low %v1001, %v1015
    %v1024 = vcombine.high %v1001, %v1015
    %v1025 = vcombine.low %v1008, %v1022
    %v1026 = vcombine.high %v1008, %v1022
    %v1035 = vpack.c.bf16 %v987, %v987
    %v1036 = vpack.c.bf16 %v988, %v988
    %v1037 = vpack.c.bf16 %v989, %v989
    %v1038 = vpack.c.bf16 %v990, %v990
    %v1039 = vpack.c.bf16 %v1023, %v1023
    %v1040 = vpack.c.bf16 %v1024, %v1024
    %v1041 = vpack.c.bf16 %v1025, %v1025
    %v1042 = vpack.c.bf16 %v1026, %v1026
    %1043 = vmatprep.subr.bf16.mxu0 0
    %1044 = vmatpush1.bf16.msra.mxu0 %v554
    %1045 = vmatprep.subr.bf16.mxu0 0
    %1046 = vmatpush1.bf16.msra.mxu0 %v555
    %1047 = vmatprep.subr.bf16.mxu0 0
    %1048 = vmatpush1.bf16.msra.mxu0 %v556
    %1049 = vmatprep.subr.bf16.mxu0 0
    %1050 = vmatpush1.bf16.msra.mxu0 %v557
    %1051 = vmatprep.subr.bf16.mxu0 0
    %1052 = vmatpush1.bf16.msra.mxu0 %v558
    %1053 = vmatprep.subr.bf16.mxu0 0
    %1054 = vmatpush1.bf16.msra.mxu0 %v559
    %1055 = vmatprep.subr.bf16.mxu0 0
    %1056 = vmatpush1.bf16.msra.mxu0 %v560
    %1057 = vmatprep.subr.bf16.mxu0 0
    %1058 = vmatpush1.bf16.msra.mxu0 %v561
    %1059 = vmatprep.subr.bf16.mxu0 0
    %1060 = vmatpush1.bf16.msra.mxu0 %v562
    %1061 = vmatprep.subr.bf16.mxu0 0
    %1062 = vmatpush1.bf16.msra.mxu0 %v563
    %1063 = vmatprep.subr.bf16.mxu0 0
    %1064 = vmatpush1.bf16.msra.mxu0 %v564
    %1065 = vmatprep.subr.bf16.mxu0 0
    %1066 = vmatpush1.bf16.msra.mxu0 %v565
    %1067 = vmatprep.subr.bf16.mxu0 0
    %1068 = vmatpush1.bf16.msra.mxu0 %v566
    %1069 = vmatprep.subr.bf16.mxu0 0
    %1070 = vmatpush1.bf16.msra.mxu0 %v567
    %1071 = vmatprep.subr.bf16.mxu0 0
    %1072 = vmatpush1.bf16.msra.mxu0 %v568
    %1073 = vmatprep.subr.bf16.mxu0 0
    %1074 = vmatpush1.bf16.msra.mxu0 %v569
    %1075 = vmatprep.mubr.bf16.mxu0 %v1036
    %1076 = vmatmul.mubr.bf16.gmra.mrb[0].mxu0 %v1035
    %v1077 = vpop.f32.mrb[0].mxu0
    %v1078 = vadd.f32 %v296, %v1077
    %v1079 = vpop.f32.mrb[0].mxu0
    %v1080 = vpop.f32.mrb[0].mxu0
    %v1081 = vpop.f32.mrb[0].mxu0
    %1082 = vdwg.mxu0
    %1083 = vmatprep.subr.bf16.mxu0 0
    %1084 = vmatpush1.bf16.msra.mxu0 %v570
    %1085 = vmatprep.subr.bf16.mxu0 0
    %1086 = vmatpush1.bf16.msra.mxu0 %v571
    %1087 = vmatprep.subr.bf16.mxu0 0
    %1088 = vmatpush1.bf16.msra.mxu0 %v572
    %1089 = vmatprep.subr.bf16.mxu0 0
    %1090 = vmatpush1.bf16.msra.mxu0 %v573
    %1091 = vmatprep.subr.bf16.mxu0 0
    %1092 = vmatpush1.bf16.msra.mxu0 %v574
    %1093 = vmatprep.subr.bf16.mxu0 0
    %1094 = vmatpush1.bf16.msra.mxu0 %v575
    %1095 = vmatprep.subr.bf16.mxu0 0
    %1096 = vmatpush1.bf16.msra.mxu0 %v576
    %1097 = vmatprep.subr.bf16.mxu0 0
    %1098 = vmatpush1.bf16.msra.mxu0 %v577
    %1099 = vmatprep.subr.bf16.mxu0 0
    %1100 = vmatpush1.bf16.msra.mxu0 %v578
    %1101 = vmatprep.subr.bf16.mxu0 0
    %1102 = vmatpush1.bf16.msra.mxu0 %v579
    %1103 = vmatprep.subr.bf16.mxu0 0
    %1104 = vmatpush1.bf16.msra.mxu0 %v580
    %1105 = vmatprep.subr.bf16.mxu0 0
    %1106 = vmatpush1.bf16.msra.mxu0 %v581
    %1107 = vmatprep.subr.bf16.mxu0 0
    %1108 = vmatpush1.bf16.msra.mxu0 %v582
    %1109 = vmatprep.subr.bf16.mxu0 0
    %1110 = vmatpush1.bf16.msra.mxu0 %v583
    %1111 = vmatprep.subr.bf16.mxu0 0
    %1112 = vmatpush1.bf16.msra.mxu0 %v584
    %1113 = vmatprep.subr.bf16.mxu0 0
    %1114 = vmatpush1.bf16.msra.mxu0 %v585
    %1115 = vmatprep.mubr.bf16.mxu0 %v1038
    %1116 = vmatmul.mubr.bf16.gmra.mrb[0].mxu0 %v1037
    %v1117 = vpop.f32.mrb[0].mxu0
    %v1118 = vadd.f32 %v1078, %v1117
    %v1119 = vpop.f32.mrb[0].mxu0
    %v1120 = vpop.f32.mrb[0].mxu0
    %v1121 = vpop.f32.mrb[0].mxu0
    %1122 = vdwg.mxu0
    %1123 = vmatprep.subr.bf16.mxu0 0
    %1124 = vmatpush1.bf16.msra.mxu0 %v586
    %1125 = vmatprep.subr.bf16.mxu0 0
    %1126 = vmatpush1.bf16.msra.mxu0 %v587
    %1127 = vmatprep.subr.bf16.mxu0 0
    %1128 = vmatpush1.bf16.msra.mxu0 %v588
    %1129 = vmatprep.subr.bf16.mxu0 0
    %1130 = vmatpush1.bf16.msra.mxu0 %v589
    %1131 = vmatprep.subr.bf16.mxu0 0
    %1132 = vmatpush1.bf16.msra.mxu0 %v590
    %1133 = vmatprep.subr.bf16.mxu0 0
    %1134 = vmatpush1.bf16.msra.mxu0 %v591
    %1135 = vmatprep.subr.bf16.mxu0 0
    %1136 = vmatpush1.bf16.msra.mxu0 %v592
    %1137 = vmatprep.subr.bf16.mxu0 0
    %1138 = vmatpush1.bf16.msra.mxu0 %v593
    %1139 = vmatprep.subr.bf16.mxu0 0
    %1140 = vmatpush1.bf16.msra.mxu0 %v594
    %1141 = vmatprep.subr.bf16.mxu0 0
    %1142 = vmatpush1.bf16.msra.mxu0 %v595
    %1143 = vmatprep.subr.bf16.mxu0 0
    %1144 = vmatpush1.bf16.msra.mxu0 %v596
    %1145 = vmatprep.subr.bf16.mxu0 0
    %1146 = vmatpush1.bf16.msra.mxu0 %v597
    %1147 = vmatprep.subr.bf16.mxu0 0
    %1148 = vmatpush1.bf16.msra.mxu0 %v598
    %1149 = vmatprep.subr.bf16.mxu0 0
    %1150 = vmatpush1.bf16.msra.mxu0 %v599
    %1151 = vmatprep.subr.bf16.mxu0 0
    %1152 = vmatpush1.bf16.msra.mxu0 %v600
    %1153 = vmatprep.subr.bf16.mxu0 0
    %1154 = vmatpush1.bf16.msra.mxu0 %v601
    %1155 = vmatprep.mubr.bf16.mxu0 %v1040
    %1156 = vmatmul.mubr.bf16.gmra.mrb[0].mxu0 %v1039
    %v1157 = vpop.f32.mrb[0].mxu0
    %v1158 = vadd.f32 %v1118, %v1157
    %v1159 = vpop.f32.mrb[0].mxu0
    %v1160 = vpop.f32.mrb[0].mxu0
    %v1161 = vpop.f32.mrb[0].mxu0
    %1162 = vdwg.mxu0
    %1163 = vmatprep.subr.bf16.mxu0 0
    %1164 = vmatpush1.bf16.msra.mxu0 %v602
    %1165 = vmatprep.subr.bf16.mxu0 0
    %1166 = vmatpush1.bf16.msra.mxu0 %v603
    %1167 = vmatprep.subr.bf16.mxu0 0
    %1168 = vmatpush1.bf16.msra.mxu0 %v604
    %1169 = vmatprep.subr.bf16.mxu0 0
    %1170 = vmatpush1.bf16.msra.mxu0 %v605
    %1171 = vmatprep.subr.bf16.mxu0 0
    %1172 = vmatpush1.bf16.msra.mxu0 %v606
    %1173 = vmatprep.subr.bf16.mxu0 0
    %1174 = vmatpush1.bf16.msra.mxu0 %v607
    %1175 = vmatprep.subr.bf16.mxu0 0
    %1176 = vmatpush1.bf16.msra.mxu0 %v608
    %1177 = vmatprep.subr.bf16.mxu0 0
    %1178 = vmatpush1.bf16.msra.mxu0 %v609
    %1179 = vmatprep.subr.bf16.mxu0 0
    %1180 = vmatpush1.bf16.msra.mxu0 %v610
    %1181 = vmatprep.subr.bf16.mxu0 0
    %1182 = vmatpush1.bf16.msra.mxu0 %v611
    %1183 = vmatprep.subr.bf16.mxu0 0
    %1184 = vmatpush1.bf16.msra.mxu0 %v612
    %1185 = vmatprep.subr.bf16.mxu0 0
    %1186 = vmatpush1.bf16.msra.mxu0 %v613
    %1187 = vmatprep.subr.bf16.mxu0 0
    %1188 = vmatpush1.bf16.msra.mxu0 %v614
    %1189 = vmatprep.subr.bf16.mxu0 0
    %1190 = vmatpush1.bf16.msra.mxu0 %v615
    %1191 = vmatprep.subr.bf16.mxu0 0
    %1192 = vmatpush1.bf16.msra.mxu0 %v616
    %1193 = vmatprep.subr.bf16.mxu0 0
    %1194 = vmatpush1.bf16.msra.mxu0 %v617
    %1195 = vmatprep.mubr.bf16.mxu0 %v1042
    %1196 = vmatmul.mubr.bf16.gmra.mrb[0].mxu0 %v1041
    %v1197 = vpop.f32.mrb[0].mxu0
    %v1198 = vadd.f32 %v1158, %v1197
    %v1199 = vpop.f32.mrb[0].mxu0
    %v1200 = vpop.f32.mrb[0].mxu0
    %v1201 = vpop.f32.mrb[0].mxu0
    %1202 = vdwg.mxu0
    %v1203 = vmax.f32 %v1198, 0.0
    %v1204 = vpack.c.bf16 %v1203, %v1203
    %1205 = vmatprep.subr.bf16.mxu0 0
    %1206 = vmatpush1.bf16.msra.mxu0 %v882
    %1207 = vmatprep.subr.bf16.mxu0 0
    %1208 = vmatpush1.bf16.msra.mxu0 %v883
    %1209 = vmatprep.subr.bf16.mxu0 0
    %1210 = vmatpush1.bf16.msra.mxu0 %v884
    %1211 = vmatprep.subr.bf16.mxu0 0
    %1212 = vmatpush1.bf16.msra.mxu0 %v885
    %1213 = vmatprep.subr.bf16.mxu0 0
    %1214 = vmatpush1.bf16.msra.mxu0 %v886
    %1215 = vmatprep.subr.bf16.mxu0 0
    %1216 = vmatpush1.bf16.msra.mxu0 %v887
    %1217 = vmatprep.subr.bf16.mxu0 0
    %1218 = vmatpush1.bf16.msra.mxu0 %v888
    %1219 = vmatprep.subr.bf16.mxu0 0
    %1220 = vmatpush1.bf16.msra.mxu0 %v889
    %1221 = vmatprep.subr.bf16.mxu0 0
    %1222 = vmatpush1.bf16.msra.mxu0 0
    %1223 = vmatprep.subr.bf16.mxu0 0
    %1224 = vmatpush1.bf16.msra.mxu0 0
    %1225 = vmatprep.subr.bf16.mxu0 0
    %1226 = vmatpush1.bf16.msra.mxu0 0
    %1227 = vmatprep.subr.bf16.mxu0 0
    %1228 = vmatpush1.bf16.msra.mxu0 0
    %1229 = vmatprep.subr.bf16.mxu0 0
    %1230 = vmatpush1.bf16.msra.mxu0 0
    %1231 = vmatprep.subr.bf16.mxu0 0
    %1232 = vmatpush1.bf16.msra.mxu0 0
    %1233 = vmatprep.subr.bf16.mxu0 0
    %1234 = vmatpush1.bf16.msra.mxu0 0
    %1235 = vmatprep.subr.bf16.mxu0 0
    %1236 = vmatpush1.bf16.msra.mxu0 0
    %1237 = vmatprep.mubr.bf16.mxu0 0
    %1238 = vmatmul.mubr.bf16.gmra.mrb[0].mxu0 %v1204
    %v1239 = vpop.f32.mrb[0].mxu0
    %v1240 = vadd.f32 %v848, %v1239
    %v1241 = vpop.f32.mrb[0].mxu0
    %v1242 = vpop.f32.mrb[0].mxu0
    %v1243 = vpop.f32.mrb[0].mxu0
    %1244 = vdwg.mxu0
    %1245 = vst [vmem:[#allocation6] sm:$0xff] %v1240
    // Predicated region
    $region30: #{siamese_forward.1} parent=1 // pred_check
      _
    $region31: #{siamese_forward.1} parent=1 // pred_check_branch
      %1247 = sbr.rel (0) target = $region33
    $region32: #{siamese_forward.1} parent=1 // pred_region
      %s1249 = ssub.s32 128, 32
      %1250 = vsyncadd [#allocation4], %s1249
      %s1251 = sshll.u32 [#allocation5], 4
      %s1252 = int_to_ptr.vmem [resolvable:$true] %s1251
      %1257 = dma.vmem_to_hbm [thread:$0]  %s1252, 32, %s6, [#allocation4], 32, 32, 2
    $region33: #{siamese_forward.1} parent=1 // pred_fallthru
      _
    // Predicated region
    $region34: #{siamese_forward.1} parent=1 // pred_check
      _
    $region35: #{siamese_forward.1} parent=1 // pred_check_branch
      %1259 = sbr.rel (0) target = $region37
    $region36: #{siamese_forward.1} parent=1 // pred_region
      %s1261 = ssub.s32 128, 32
      %1262 = vsyncadd [#allocation7], %s1261
      %s1263 = sshll.u32 [#allocation6], 4
      %s1264 = int_to_ptr.vmem [resolvable:$true] %s1263
      %1269 = dma.vmem_to_hbm [thread:$0]  %s1264, 32, %s7, [#allocation7], 32, 32, 2
    $region37: #{siamese_forward.1} parent=1 // pred_fallthru
      _
    // Predicated region
    $region38: #{siamese_forward.1} parent=1 // pred_check
      _
    $region39: #{siamese_forward.1} parent=1 // pred_check_branch
      %1271 = sbr.rel (0) target = $region41
    $region40: #{siamese_forward.1} parent=1 // pred_region
      %1272 = dma.done [#allocation4], 128
    $region41: #{siamese_forward.1} parent=1 // pred_fallthru
      _
    // Predicated region
    $region42: #{siamese_forward.1} parent=1 // pred_check
      _
    $region43: #{siamese_forward.1} parent=1 // pred_check_branch
      %1274 = sbr.rel (0) target = $region45
    $region44: #{siamese_forward.1} parent=1 // pred_region
      %1275 = dma.done [#allocation7], 128
    $region45: #{siamese_forward.1} parent=1 // pred_fallthru
      _
    %1276 = vsyncpa [#allocation3], 1
    %1277 = vsyncpa [#allocation4], 1
    %1278 = vsyncpa [#allocation7], 1

</llo_original>
